<compile_context>
chip_gen: v7x
topology: tpu7x:2x2x1
jax: 0.10.0
libtpu: 0.0.40
codegen_flags: <defaults>
</compile_context>

<pallas_src>
import jax
import jax.numpy as jnp
from jax.experimental import pallas as pl
from jax.experimental.pallas import tpu as pltpu

LATENT_DIM = 128
HIDDEN_DIM = 256
OUTPUT_DIM = 512


def decoder_kernel(z_ref, w1_ref, b1_ref, w2_ref, b2_ref, out_ref, h_ref):
    # fc1: (tile, L) @ (L, H) on the MXU, bf16 inputs, f32 accumulation.
    h = jnp.dot(z_ref[...].astype(jnp.bfloat16), w1_ref[...],
                preferred_element_type=jnp.float32)
    # Bias + ReLU in f32; fuse the bf16 downcast into the scratch store so the
    # staging buffer (and its load/store traffic) is half-width.
    h_ref[...] = jnp.maximum(h + b1_ref[...], 0.0).astype(jnp.bfloat16)
    # fc2: (tile, H) @ (H, O), bf16 inputs straight from scratch, f32 accum.
    r = jnp.dot(h_ref[...], w2_ref[...], preferred_element_type=jnp.float32)
    out_ref[...] = (r + b2_ref[...]).astype(out_ref.dtype)


def decoder_forward(z, w1, b1, w2, b2, *, batch_tile=512):
    """z: (B, latent). w1: (latent, hidden), w2: (hidden, out) (transposed vs torch).

    batch_tile is the main tuning knob. Keep it in 512..1024: the mem-bound
    tiling plateau is reached by then, and larger tiles both pressure v7x's
    scoped VMEM and steal grid steps from 2-TC sharding. The tile is also
    shrunk so the grid has >=2 steps whenever B allows it.
    """
    B, L = z.shape
    H = w1.shape[1]
    O = w2.shape[1]

    # MXU-friendly dtypes: bf16 weights (f32 accumulate in-kernel), f32 biases.
    w1_bf = w1.astype(jnp.bfloat16)
    w2_bf = w2.astype(jnp.bfloat16)
    b1_2d = b1.reshape(1, H).astype(jnp.float32)
    b2_2d = b2.reshape(1, O).astype(jnp.float32)

    # Batch tile: multiple of 8 (f32 sublane), capped at 1024, and capped at
    # round_up(cdiv(B, 2), 8) so there are >=2 grid steps for v7x's two TCs.
    tile = min(int(batch_tile), 1024)
    tile = min(tile, pl.cdiv(B, 2) + (-pl.cdiv(B, 2)) % 8)  # round_up(cdiv(B,2), 8)
    tile = max(8, (tile // 8) * 8)

    grid = (pl.cdiv(B, tile),)  # ragged last block handled by Pallas masking

    cost = pl.CostEstimate(
        flops=2 * B * (L * H + H * O),
        transcendentals=0,
        bytes_accessed=B * (L * 4 + O * 4) + (L * H + H * O) * 2 + (H + O) * 4,
    )

    out = pl.pallas_call(
        decoder_kernel,
        out_shape=jax.ShapeDtypeStruct((B, O), z.dtype),
        grid_spec=pltpu.PrefetchScalarGridSpec(
            num_scalar_prefetch=0,
            grid=grid,
            in_specs=[
                pl.BlockSpec((tile, L), lambda i: (i, 0)),   # z tile (pipelined)
                # Weights/biases: constant block index -> DMA'd once, then
                # VMEM-resident for every grid step (no re-fetch).
                pl.BlockSpec((L, H), lambda i: (0, 0)),      # W1 (bf16, whole)
                pl.BlockSpec((1, H), lambda i: (0, 0)),      # b1 (f32)
                pl.BlockSpec((H, O), lambda i: (0, 0)),      # W2 (bf16, whole)
                pl.BlockSpec((1, O), lambda i: (0, 0)),      # b2 (f32)
            ],
            out_specs=pl.BlockSpec((tile, O), lambda i: (i, 0)),
            scratch_shapes=[pltpu.VMEM((tile, H), jnp.bfloat16)],  # hidden act
        ),
        compiler_params=pltpu.CompilerParams(
            dimension_semantics=("parallel",),  # batch tiles -> both TCs on v7x
        ),
        cost_estimate=cost,
    )(z, w1_bf, b1_2d, w2_bf, b2_2d)

    return out


def reference_forward(z, w1, b1, w2, b2):
    h = jnp.maximum(
        jnp.dot(z, w1, precision=jax.lax.Precision.HIGHEST) + b1, 0.0)
    return jnp.dot(h, w2, precision=jax.lax.Precision.HIGHEST) + b2


if __name__ == "__main__":
    key = jax.random.PRNGKey(0)
    k_z, k_w1, k_b1, k_w2, k_b2 = jax.random.split(key, 5)

    B = 8  # small demo batch
    z = jax.random.normal(k_z, (B, LATENT_DIM), dtype=jnp.float32)
    # PyTorch Linear weight is (out, in); we store transposed (in, out).
    w1 = jax.random.normal(k_w1, (LATENT_DIM, HIDDEN_DIM), dtype=jnp.float32) * 0.05
    b1 = jax.random.normal(k_b1, (HIDDEN_DIM,), dtype=jnp.float32) * 0.05
    w2 = jax.random.normal(k_w2, (HIDDEN_DIM, OUTPUT_DIM), dtype=jnp.float32) * 0.05
    b2 = jax.random.normal(k_b2, (OUTPUT_DIM,), dtype=jnp.float32) * 0.05

    out = decoder_forward(z, w1, b1, w2, b2)
    out = jax.block_until_ready(out)
    ref = reference_forward(z, w1, b1, w2, b2)
    assert out.shape == (B, OUTPUT_DIM)
    # bf16 MXU inputs with f32 accumulation -> relative error ~0.5%.
    assert jnp.allclose(out, ref, atol=2e-2, rtol=2e-2), "mismatch vs reference"

    # Also exercise the ragged-last-block path (B not a multiple of the tile).
    B2 = 20
    z2 = jax.random.normal(k_z, (B2, LATENT_DIM), dtype=jnp.float32)
    out2 = jax.block_until_ready(decoder_forward(z2, w1, b1, w2, b2))
    ref2 = reference_forward(z2, w1, b1, w2, b2)
    assert out2.shape == (B2, OUTPUT_DIM)
    assert jnp.allclose(out2, ref2, atol=2e-2, rtol=2e-2), "mismatch (ragged batch)"

    print("KERNEL_OK")
</pallas_src>

<mosaic_0001>
module attributes {stable_mosaic.version = 11 : i64} {
  func.func @decoder_kernel(%arg0: i32, %arg1: memref<8x128xf32, #tpu.memory_space<vmem>>, %arg2: memref<128x256xbf16, #tpu.memory_space<vmem>>, %arg3: memref<1x256xf32, #tpu.memory_space<vmem>>, %arg4: memref<256x512xbf16, #tpu.memory_space<vmem>>, %arg5: memref<1x512xf32, #tpu.memory_space<vmem>>, %arg6: memref<8x512xf32, #tpu.memory_space<vmem>>, %arg7: memref<8x256xbf16, #tpu.memory_space<vmem>>) attributes {dimension_semantics = [#tpu.dimension_semantics<parallel>], iteration_bounds = array<i64: 1>, scalar_prefetch = 0 : i64, scratch_operands = 1 : i64, tpu.core_type = #tpu.core_type<tc>, window_params = [{transform_indices = @transform_0, window_bounds = array<i64: 8, 128>}, {pipeline_mode = #tpu.pipeline_mode<synchronous>, transform_indices = @transform_1, window_bounds = array<i64: 128, 256>}, {pipeline_mode = #tpu.pipeline_mode<synchronous>, transform_indices = @transform_2, window_bounds = array<i64: 1, 256>}, {pipeline_mode = #tpu.pipeline_mode<synchronous>, transform_indices = @transform_3, window_bounds = array<i64: 256, 512>}, {pipeline_mode = #tpu.pipeline_mode<synchronous>, transform_indices = @transform_4, window_bounds = array<i64: 1, 512>}, {transform_indices = @transform_5, window_bounds = array<i64: 8, 512>}]} {
    %c0 = arith.constant 0 : index
    %c0_0 = arith.constant 0 : index
    %0 = vector.load %arg1[%c0, %c0_0] : memref<8x128xf32, #tpu.memory_space<vmem>>, vector<8x128xf32>
    %1 = arith.truncf %0 : vector<8x128xf32> to vector<8x128xbf16>
    %c0_1 = arith.constant 0 : index
    %c0_2 = arith.constant 0 : index
    %2 = vector.load %arg2[%c0_1, %c0_2] : memref<128x256xbf16, #tpu.memory_space<vmem>>, vector<128x256xbf16>
    %cst = arith.constant dense<0.000000e+00> : vector<8x256xf32>
    %3 = tpu.matmul %1, %2, %cst {dimension_numbers = #tpu.dot_dimension_numbers<[1], [0], [0], [1], [0, 0, 1, 1], [], []>} : vector<8x128xbf16>, vector<128x256xbf16>, vector<8x256xf32> -> vector<8x256xf32>
    %c0_3 = arith.constant 0 : index
    %c0_4 = arith.constant 0 : index
    %4 = vector.load %arg3[%c0_3, %c0_4] : memref<1x256xf32, #tpu.memory_space<vmem>>, vector<1x256xf32>
    %5 = vector.broadcast %4 : vector<1x256xf32> to vector<8x256xf32>
    %6 = arith.addf %3, %5 : vector<8x256xf32>
    %cst_5 = arith.constant 0.000000e+00 : f32
    %7 = vector.broadcast %cst_5 : f32 to vector<8x256xf32>
    %8 = arith.maximumf %6, %7 : vector<8x256xf32>
    %9 = arith.truncf %8 : vector<8x256xf32> to vector<8x256xbf16>
    %c0_6 = arith.constant 0 : index
    %c0_7 = arith.constant 0 : index
    %10 = vector.load %arg7[%c0_6, %c0_7] : memref<8x256xbf16, #tpu.memory_space<vmem>>, vector<8x256xbf16>
    tpu.vector_store %arg7[%c0_6, %c0_7], %9 {strides = array<i32>} : memref<8x256xbf16, #tpu.memory_space<vmem>>, vector<8x256xbf16>,
    %c0_8 = arith.constant 0 : index
    %c0_9 = arith.constant 0 : index
    %11 = vector.load %arg7[%c0_8, %c0_9] : memref<8x256xbf16, #tpu.memory_space<vmem>>, vector<8x256xbf16>
    %c0_10 = arith.constant 0 : index
    %c0_11 = arith.constant 0 : index
    %12 = vector.load %arg4[%c0_10, %c0_11] : memref<256x512xbf16, #tpu.memory_space<vmem>>, vector<256x512xbf16>
    %cst_12 = arith.constant dense<0.000000e+00> : vector<8x512xf32>
    %13 = tpu.matmul %11, %12, %cst_12 {dimension_numbers = #tpu.dot_dimension_numbers<[1], [0], [0], [1], [0, 0, 1, 1], [], []>} : vector<8x256xbf16>, vector<256x512xbf16>, vector<8x512xf32> -> vector<8x512xf32>
    %c0_13 = arith.constant 0 : index
    %c0_14 = arith.constant 0 : index
    %14 = vector.load %arg5[%c0_13, %c0_14] : memref<1x512xf32, #tpu.memory_space<vmem>>, vector<1x512xf32>
    %15 = vector.broadcast %14 : vector<1x512xf32> to vector<8x512xf32>
    %16 = arith.addf %13, %15 : vector<8x512xf32>
    %c0_15 = arith.constant 0 : index
    %c0_16 = arith.constant 0 : index
    %17 = vector.load %arg6[%c0_15, %c0_16] : memref<8x512xf32, #tpu.memory_space<vmem>>, vector<8x512xf32>
    tpu.vector_store %arg6[%c0_15, %c0_16], %16 {strides = array<i32>} : memref<8x512xf32, #tpu.memory_space<vmem>>, vector<8x512xf32>,
    return
  }
  func.func @transform_0(%arg0: i32) -> (i32, i32) {
    %c0_i32 = arith.constant 0 : i32
    %c0_i32_0 = arith.constant 0 : i32
    return %arg0, %c0_i32 : i32, i32
  }
  func.func @transform_1(%arg0: i32) -> (i32, i32) {
    %c0_i32 = arith.constant 0 : i32
    %c0_i32_0 = arith.constant 0 : i32
    %c0_i32_1 = arith.constant 0 : i32
    return %c0_i32, %c0_i32_0 : i32, i32
  }
  func.func @transform_2(%arg0: i32) -> (i32, i32) {
    %c0_i32 = arith.constant 0 : i32
    %c0_i32_0 = arith.constant 0 : i32
    %c0_i32_1 = arith.constant 0 : i32
    return %c0_i32, %c0_i32_0 : i32, i32
  }
  func.func @transform_3(%arg0: i32) -> (i32, i32) {
    %c0_i32 = arith.constant 0 : i32
    %c0_i32_0 = arith.constant 0 : i32
    %c0_i32_1 = arith.constant 0 : i32
    return %c0_i32, %c0_i32_0 : i32, i32
  }
  func.func @transform_4(%arg0: i32) -> (i32, i32) {
    %c0_i32 = arith.constant 0 : i32
    %c0_i32_0 = arith.constant 0 : i32
    %c0_i32_1 = arith.constant 0 : i32
    return %c0_i32, %c0_i32_0 : i32, i32
  }
  func.func @transform_5(%arg0: i32) -> (i32, i32) {
    %c0_i32 = arith.constant 0 : i32
    %c0_i32_0 = arith.constant 0 : i32
    return %arg0, %c0_i32 : i32, i32
  }
}

</mosaic_0001>

<llo_original>
// kernel: tpu_custom_call.1
$region0: #{tpu_custom_call.1}
  #allocation0 [shape = 'u32[]', space=smem, size = 0x4, offset = 0x4, fixed_abs, tag = 'smem constant byte address 0x4 - core index']
  #allocation1 [shape = 'u32[144,128]{1,0:T(1,128)}', space=vmem, size = 0x12000, scoped, tag = 'internal scratch']
  #allocation2 [shape = 'bf16[8,256]{1,0:T(8,128)(2,1)}', space=vmem, size = 0x1000, scoped, tag = 'scratch operand']
  %s0 = inlined_call_operand.hbm [shape: f32[8,128], index: 0, kind: input, shape index: {}]
  %s1 = inlined_call_operand.hbm [shape: bf16[128,256], index: 1, kind: input, shape index: {}]
  %s2 = inlined_call_operand.vmem [shape: f32[1,256], index: 2, kind: input, shape index: {}]
  %s3 = inlined_call_operand.hbm [shape: bf16[256,512], index: 3, kind: input, shape index: {}]
  %s4 = inlined_call_operand.vmem [shape: f32[1,512], index: 4, kind: input, shape index: {}]
  %s5 = inlined_call_operand.hbm [shape: f32[8,512], index: 5, kind: output, shape index: {}]
  %s6 = sld [smem:[#allocation0]]
  $region42: #{tpu_custom_call.1} parent=0
    _
  %s8 = ssub.s32 1, %s6
  %s9 = scalar_select 0, %s8, %s6
  $region1: #{tpu_custom_call.1} parent=0
    #allocation3 [shape = 'u8[4096]{0}', space=vmem, size = 0x1000, scoped, tag = 'input window, operand 0, single buffered']
    #allocation4 [shape = 's32[1]{0}', space=sflag, size = 0x4, scoped, tag = 'scoped memory for tpu_custom_call.1']
    #allocation5 [shape = 's32[1]{0}', space=sflag, size = 0x4, scoped, tag = 'scoped memory for tpu_custom_call.1']
    #allocation6 [shape = 'u8[65536]{0}', space=vmem, size = 0x10000, scoped, tag = 'input window, operand 1, single buffered']
    #allocation7 [shape = 's32[1]{0}', space=sflag, size = 0x4, scoped, tag = 'scoped memory for tpu_custom_call.1']
    #allocation8 [shape = 'u8[262144]{0}', space=vmem, size = 0x40000, scoped, tag = 'input window, operand 3, single buffered']
    #allocation9 [shape = 'u8[16384]{0}', space=vmem, size = 0x4000, scoped, tag = 'output window, operand 0, single buffered']
    %10 = vsyncpa [#allocation4], 0
    %11 = vsyncpa [#allocation7], 0
    %12 = vsyncpa [#allocation5], 0
    // Predicated region
    $region2: #{tpu_custom_call.1} parent=1 // pred_check
      _
    $region3: #{tpu_custom_call.1} parent=1 // pred_check_branch
      %14 = sbr.rel (0) target = $region5
    $region4: #{tpu_custom_call.1} parent=1 // pred_region
      %s16 = ssub.s32 128, 128
      %17 = vsyncadd [#allocation4], %s16
      %s19 = sshll.u32 [#allocation3], 4
      %s20 = int_to_ptr.vmem [resolvable:$true] %s19
      %22 = dma.hbm_to_vmem [thread:$0]  %s0, 128, %s20, [#allocation4]
    $region5: #{tpu_custom_call.1} parent=1 // pred_fallthru
      _
    // Predicated region
    $region6: #{tpu_custom_call.1} parent=1 // pred_check
      _
    $region7: #{tpu_custom_call.1} parent=1 // pred_check_branch
      %24 = sbr.rel (0) target = $region9
    $region8: #{tpu_custom_call.1} parent=1 // pred_region
      %s26 = ssub.s32 2048, 2048
      %27 = vsyncadd [#allocation7], %s26
      %s28 = sshll.u32 [#allocation6], 4
      %s29 = int_to_ptr.vmem [resolvable:$true] %s28
      %34 = dma.hbm_to_vmem [thread:$0]  %s1, 2048, %s29, [#allocation7], 128, 128, 8
    $region9: #{tpu_custom_call.1} parent=1 // pred_fallthru
      _
    // Predicated region
    $region10: #{tpu_custom_call.1} parent=1 // pred_check
      _
    $region11: #{tpu_custom_call.1} parent=1 // pred_check_branch
      %36 = sbr.rel (0) target = $region13
    $region12: #{tpu_custom_call.1} parent=1 // pred_region
      _
    $region13: #{tpu_custom_call.1} parent=1 // pred_fallthru
      _
    // Predicated region
    $region14: #{tpu_custom_call.1} parent=1 // pred_check
      _
    $region15: #{tpu_custom_call.1} parent=1 // pred_check_branch
      %38 = sbr.rel (0) target = $region17
    $region16: #{tpu_custom_call.1} parent=1 // pred_region
      %s40 = ssub.s32 8192, 8192
      %41 = vsyncadd [#allocation7], %s40
      %s42 = sshll.u32 [#allocation8], 4
      %s43 = int_to_ptr.vmem [resolvable:$true] %s42
      %48 = dma.hbm_to_vmem [thread:$0]  %s3, 8192, %s43, [#allocation7], 256, 256, 16
    $region17: #{tpu_custom_call.1} parent=1 // pred_fallthru
      _
    // Predicated region
    $region18: #{tpu_custom_call.1} parent=1 // pred_check
      _
    $region19: #{tpu_custom_call.1} parent=1 // pred_check_branch
      %50 = sbr.rel (0) target = $region21
    $region20: #{tpu_custom_call.1} parent=1 // pred_region
      _
    $region21: #{tpu_custom_call.1} parent=1 // pred_fallthru
      _
    // Predicated region
    $region22: #{tpu_custom_call.1} parent=1 // pred_check
      _
    $region23: #{tpu_custom_call.1} parent=1 // pred_check_branch
      %52 = sbr.rel (0) target = $region25
    $region24: #{tpu_custom_call.1} parent=1 // pred_region
      %53 = dma.done [#allocation4], 128
    $region25: #{tpu_custom_call.1} parent=1 // pred_fallthru
      _
    // Predicated region
    $region26: #{tpu_custom_call.1} parent=1 // pred_check
      _
    $region27: #{tpu_custom_call.1} parent=1 // pred_check_branch
      %55 = sbr.rel (0) target = $region29
    $region28: #{tpu_custom_call.1} parent=1 // pred_region
      %56 = dma.done [#allocation7], 2048
    $region29: #{tpu_custom_call.1} parent=1 // pred_fallthru
      _
    // Predicated region
    $region30: #{tpu_custom_call.1} parent=1 // pred_check
      _
    $region31: #{tpu_custom_call.1} parent=1 // pred_check_branch
      %58 = sbr.rel (0) target = $region33
    $region32: #{tpu_custom_call.1} parent=1 // pred_region
      %59 = dma.done [#allocation7], 8192
    $region33: #{tpu_custom_call.1} parent=1 // pred_fallthru
      _
    %v61 = vld [vmem:[#allocation3] sm:$0xff]
    %v62 = vpack.c.bf16 %v61, %v61
    %v63 = vld [vmem:[#allocation6] sm:$0xff]
    %v64 = vld [vmem:[#allocation6 + $0x8] sm:$0xff]
    %v65 = vld [vmem:[#allocation6 + $0x10] sm:$0xff]
    %v66 = vld [vmem:[#allocation6 + $0x18] sm:$0xff]
    %v67 = vld [vmem:[#allocation6 + $0x20] sm:$0xff]
    %v68 = vld [vmem:[#allocation6 + $0x28] sm:$0xff]
    %v69 = vld [vmem:[#allocation6 + $0x30] sm:$0xff]
    %v70 = vld [vmem:[#allocation6 + $0x38] sm:$0xff]
    %v71 = vld [vmem:[#allocation6 + $0x40] sm:$0xff]
    %v72 = vld [vmem:[#allocation6 + $0x48] sm:$0xff]
    %v73 = vld [vmem:[#allocation6 + $0x50] sm:$0xff]
    %v74 = vld [vmem:[#allocation6 + $0x58] sm:$0xff]
    %v75 = vld [vmem:[#allocation6 + $0x60] sm:$0xff]
    %v76 = vld [vmem:[#allocation6 + $0x68] sm:$0xff]
    %v77 = vld [vmem:[#allocation6 + $0x70] sm:$0xff]
    %v78 = vld [vmem:[#allocation6 + $0x78] sm:$0xff]
    %v79 = vld [vmem:[%s2] sm:$0x3]
    %v81 = vlaneseq
    %v82 = vshrl.u32 %v81, 7
    %v83 = vsub.s32 0, %v82
    %v84 = vrot.slane %v79, %v83
    %v85 = vlaneseq
    %v86 = vshrl.u32 %v85, 7
    %v87 = vsub.s32 1, %v86
    %v88 = vrot.slane %v79, %v87
    %v107 = vunpack.c.l.b16 %v63
    %v108 = vunpack.c.h.b16 %v63
    %v109 = vunpack.c.l.b16 %v64
    %v110 = vunpack.c.h.b16 %v64
    %v111 = vunpack.c.l.b16 %v65
    %v112 = vunpack.c.h.b16 %v65
    %v113 = vunpack.c.l.b16 %v66
    %v114 = vunpack.c.h.b16 %v66
    %v115 = vunpack.c.l.b16 %v67
    %v116 = vunpack.c.h.b16 %v67
    %v117 = vunpack.c.l.b16 %v68
    %v118 = vunpack.c.h.b16 %v68
    %v119 = vunpack.c.l.b16 %v69
    %v120 = vunpack.c.h.b16 %v69
    %v121 = vunpack.c.l.b16 %v70
    %v122 = vunpack.c.h.b16 %v70
    %v123 = vunpack.c.l.b16 %v71
    %v124 = vunpack.c.h.b16 %v71
    %v125 = vunpack.c.l.b16 %v72
    %v126 = vunpack.c.h.b16 %v72
    %v127 = vunpack.c.l.b16 %v73
    %v128 = vunpack.c.h.b16 %v73
    %v129 = vunpack.c.l.b16 %v74
    %v130 = vunpack.c.h.b16 %v74
    %v131 = vunpack.c.l.b16 %v75
    %v132 = vunpack.c.h.b16 %v75
    %v133 = vunpack.c.l.b16 %v76
    %v134 = vunpack.c.h.b16 %v76
    %v135 = vunpack.c.l.b16 %v77
    %v136 = vunpack.c.h.b16 %v77
    %v137 = vunpack.c.l.b16 %v78
    %v138 = vunpack.c.h.b16 %v78
    %v139 = vpack.c.b16 %v109, %v107
    %v140 = vpack.c.b16 %v110, %v108
    %v141 = vpack.c.b16 %v113, %v111
    %v142 = vpack.c.b16 %v114, %v112
    %v143 = vpack.c.b16 %v117, %v115
    %v144 = vpack.c.b16 %v118, %v116
    %v145 = vpack.c.b16 %v121, %v119
    %v146 = vpack.c.b16 %v122, %v120
    %v147 = vpack.c.b16 %v125, %v123
    %v148 = vpack.c.b16 %v126, %v124
    %v149 = vpack.c.b16 %v129, %v127
    %v150 = vpack.c.b16 %v130, %v128
    %v151 = vpack.c.b16 %v133, %v131
    %v152 = vpack.c.b16 %v134, %v132
    %v153 = vpack.c.b16 %v137, %v135
    %v154 = vpack.c.b16 %v138, %v136
    %171 = vmatprep.subr.bf16.mxu0 %v140
    %172 = vmatpush1.bf16.msra.mxu0 %v139
    %173 = vmatprep.subr.bf16.mxu0 %v142
    %174 = vmatpush1.bf16.msra.mxu0 %v141
    %175 = vmatprep.subr.bf16.mxu0 %v144
    %176 = vmatpush1.bf16.msra.mxu0 %v143
    %177 = vmatprep.subr.bf16.mxu0 %v146
    %178 = vmatpush1.bf16.msra.mxu0 %v145
    %179 = vmatprep.subr.bf16.mxu0 %v148
    %180 = vmatpush1.bf16.msra.mxu0 %v147
    %181 = vmatprep.subr.bf16.mxu0 %v150
    %182 = vmatpush1.bf16.msra.mxu0 %v149
    %183 = vmatprep.subr.bf16.mxu0 %v152
    %184 = vmatpush1.bf16.msra.mxu0 %v151
    %185 = vmatprep.subr.bf16.mxu0 %v154
    %186 = vmatpush1.bf16.msra.mxu0 %v153
    %187 = vmatprep.subr.bf16.mxu0 0
    %188 = vmatpush1.bf16.msra.mxu0 0
    %189 = vmatprep.subr.bf16.mxu0 0
    %190 = vmatpush1.bf16.msra.mxu0 0
    %191 = vmatprep.subr.bf16.mxu0 0
    %192 = vmatpush1.bf16.msra.mxu0 0
    %193 = vmatprep.subr.bf16.mxu0 0
    %194 = vmatpush1.bf16.msra.mxu0 0
    %195 = vmatprep.subr.bf16.mxu0 0
    %196 = vmatpush1.bf16.msra.mxu0 0
    %197 = vmatprep.subr.bf16.mxu0 0
    %198 = vmatpush1.bf16.msra.mxu0 0
    %199 = vmatprep.subr.bf16.mxu0 0
    %200 = vmatpush1.bf16.msra.mxu0 0
    %201 = vmatprep.subr.bf16.mxu0 0
    %202 = vmatpush1.bf16.msra.mxu0 0
    %203 = vmatprep.mubr.bf16.mxu0 0
    %204 = vmatmul.mubr.bf16.gmra.mrb[0].mxu0 %v62
    %v205 = vpop.f32.mrb[0].mxu0
    %v206 = vadd.f32 %v84, %v205
    %v207 = vpop.f32.mrb[0].mxu0
    %v208 = vadd.f32 %v88, %v207
    %v209 = vpop.f32.mrb[0].mxu0
    %v210 = vpop.f32.mrb[0].mxu0
    %211 = vdwg.mxu0
    %v212 = vmax.f32 %v206, 0.0
    %v213 = vmax.f32 %v208, 0.0
    %v214 = vpack.c.bf16 %v212, %v212
    %v215 = vpack.c.bf16 %v213, %v213
    %v218 = vunpack.c.l.b16 %v214
    %v219 = vunpack.c.l.b16 %v215
    %v220 = vpack.c.b16 %v219, %v218
    %222 = vst [vmem:[#allocation2] sm:$0xff] %v220
    %v223 = vld [vmem:[#allocation2] sm:$0xff]
    %v224 = vld [vmem:[#allocation8] sm:$0xff]
    %v225 = vld [vmem:[#allocation8 + $0x8] sm:$0xff]
    %v226 = vld [vmem:[#allocation8 + $0x10] sm:$0xff]
    %v227 = vld [vmem:[#allocation8 + $0x18] sm:$0xff]
    %v228 = vld [vmem:[#allocation8 + $0x20] sm:$0xff]
    %v229 = vld [vmem:[#allocation8 + $0x28] sm:$0xff]
    %v230 = vld [vmem:[#allocation8 + $0x30] sm:$0xff]
    %v231 = vld [vmem:[#allocation8 + $0x38] sm:$0xff]
    %v232 = vld [vmem:[#allocation8 + $0x40] sm:$0xff]
    %v233 = vld [vmem:[#allocation8 + $0x48] sm:$0xff]
    %v234 = vld [vmem:[#allocation8 + $0x50] sm:$0xff]
    %v235 = vld [vmem:[#allocation8 + $0x58] sm:$0xff]
    %v236 = vld [vmem:[#allocation8 + $0x60] sm:$0xff]
    %v237 = vld [vmem:[#allocation8 + $0x68] sm:$0xff]
    %v238 = vld [vmem:[#allocation8 + $0x70] sm:$0xff]
    %v239 = vld [vmem:[#allocation8 + $0x78] sm:$0xff]
    %v240 = vld [vmem:[#allocation8 + $0x80] sm:$0xff]
    %v241 = vld [vmem:[#allocation8 + $0x88] sm:$0xff]
    %v242 = vld [vmem:[#allocation8 + $0x90] sm:$0xff]
    %v243 = vld [vmem:[#allocation8 + $0x98] sm:$0xff]
    %v244 = vld [vmem:[#allocation8 + $0xa0] sm:$0xff]
    %v245 = vld [vmem:[#allocation8 + $0xa8] sm:$0xff]
    %v246 = vld [vmem:[#allocation8 + $0xb0] sm:$0xff]
    %v247 = vld [vmem:[#allocation8 + $0xb8] sm:$0xff]
    %v248 = vld [vmem:[#allocation8 + $0xc0] sm:$0xff]
    %v249 = vld [vmem:[#allocation8 + $0xc8] sm:$0xff]
    %v250 = vld [vmem:[#allocation8 + $0xd0] sm:$0xff]
    %v251 = vld [vmem:[#allocation8 + $0xd8] sm:$0xff]
    %v252 = vld [vmem:[#allocation8 + $0xe0] sm:$0xff]
    %v253 = vld [vmem:[#allocation8 + $0xe8] sm:$0xff]
    %v254 = vld [vmem:[#allocation8 + $0xf0] sm:$0xff]
    %v255 = vld [vmem:[#allocation8 + $0xf8] sm:$0xff]
    %v256 = vld [vmem:[#allocation8 + $0x100] sm:$0xff]
    %v257 = vld [vmem:[#allocation8 + $0x108] sm:$0xff]
    %v258 = vld [vmem:[#allocation8 + $0x110] sm:$0xff]
    %v259 = vld [vmem:[#allocation8 + $0x118] sm:$0xff]
    %v260 = vld [vmem:[#allocation8 + $0x120] sm:$0xff]
    %v261 = vld [vmem:[#allocation8 + $0x128] sm:$0xff]
    %v262 = vld [vmem:[#allocation8 + $0x130] sm:$0xff]
    %v263 = vld [vmem:[#allocation8 + $0x138] sm:$0xff]
    %v264 = vld [vmem:[#allocation8 + $0x140] sm:$0xff]
    %v265 = vld [vmem:[#allocation8 + $0x148] sm:$0xff]
    %v266 = vld [vmem:[#allocation8 + $0x150] sm:$0xff]
    %v267 = vld [vmem:[#allocation8 + $0x158] sm:$0xff]
    %v268 = vld [vmem:[#allocation8 + $0x160] sm:$0xff]
    %v269 = vld [vmem:[#allocation8 + $0x168] sm:$0xff]
    %v270 = vld [vmem:[#allocation8 + $0x170] sm:$0xff]
    %v271 = vld [vmem:[#allocation8 + $0x178] sm:$0xff]
    %v272 = vld [vmem:[#allocation8 + $0x180] sm:$0xff]
    %v273 = vld [vmem:[#allocation8 + $0x188] sm:$0xff]
    %v274 = vld [vmem:[#allocation8 + $0x190] sm:$0xff]
    %v275 = vld [vmem:[#allocation8 + $0x198] sm:$0xff]
    %v276 = vld [vmem:[#allocation8 + $0x1a0] sm:$0xff]
    %v277 = vld [vmem:[#allocation8 + $0x1a8] sm:$0xff]
    %v278 = vld [vmem:[#allocation8 + $0x1b0] sm:$0xff]
    %v279 = vld [vmem:[#allocation8 + $0x1b8] sm:$0xff]
    %v280 = vld [vmem:[#allocation8 + $0x1c0] sm:$0xff]
    %v281 = vld [vmem:[#allocation8 + $0x1c8] sm:$0xff]
    %v282 = vld [vmem:[#allocation8 + $0x1d0] sm:$0xff]
    %v283 = vld [vmem:[#allocation8 + $0x1d8] sm:$0xff]
    %v284 = vld [vmem:[#allocation8 + $0x1e0] sm:$0xff]
    %v285 = vld [vmem:[#allocation8 + $0x1e8] sm:$0xff]
    %v286 = vld [vmem:[#allocation8 + $0x1f0] sm:$0xff]
    %v287 = vld [vmem:[#allocation8 + $0x1f8] sm:$0xff]
    %v288 = vld [vmem:[%s4] sm:$0xf]
    %v290 = vlaneseq
    %v291 = vshrl.u32 %v290, 7
    %v292 = vsub.s32 0, %v291
    %v293 = vrot.slane %v288, %v292
    %v294 = vlaneseq
    %v295 = vshrl.u32 %v294, 7
    %v296 = vsub.s32 1, %v295
    %v297 = vrot.slane %v288, %v296
    %v298 = vlaneseq
    %v299 = vshrl.u32 %v298, 7
    %v300 = vsub.s32 2, %v299
    %v301 = vrot.slane %v288, %v300
    %v302 = vlaneseq
    %v303 = vshrl.u32 %v302, 7
    %v304 = vsub.s32 3, %v303
    %v305 = vrot.slane %v288, %v304
    %v311 = vunpack.c.l.b16 %v223
    %v312 = vunpack.c.h.b16 %v223
    %v313 = vpack.c.b16 %v311, %v311
    %v314 = vpack.c.b16 %v312, %v312
    %v381 = vunpack.c.l.b16 %v224
    %v382 = vunpack.c.h.b16 %v224
    %v383 = vunpack.c.l.b16 %v225
    %v384 = vunpack.c.h.b16 %v225
    %v385 = vunpack.c.l.b16 %v226
    %v386 = vunpack.c.h.b16 %v226
    %v387 = vunpack.c.l.b16 %v227
    %v388 = vunpack.c.h.b16 %v227
    %v389 = vunpack.c.l.b16 %v228
    %v390 = vunpack.c.h.b16 %v228
    %v391 = vunpack.c.l.b16 %v229
    %v392 = vunpack.c.h.b16 %v229
    %v393 = vunpack.c.l.b16 %v230
    %v394 = vunpack.c.h.b16 %v230
    %v395 = vunpack.c.l.b16 %v231
    %v396 = vunpack.c.h.b16 %v231
    %v397 = vunpack.c.l.b16 %v232
    %v398 = vunpack.c.h.b16 %v232
    %v399 = vunpack.c.l.b16 %v233
    %v400 = vunpack.c.h.b16 %v233
    %v401 = vunpack.c.l.b16 %v234
    %v402 = vunpack.c.h.b16 %v234
    %v403 = vunpack.c.l.b16 %v235
    %v404 = vunpack.c.h.b16 %v235
    %v405 = vunpack.c.l.b16 %v236
    %v406 = vunpack.c.h.b16 %v236
    %v407 = vunpack.c.l.b16 %v237
    %v408 = vunpack.c.h.b16 %v237
    %v409 = vunpack.c.l.b16 %v238
    %v410 = vunpack.c.h.b16 %v238
    %v411 = vunpack.c.l.b16 %v239
    %v412 = vunpack.c.h.b16 %v239
    %v413 = vunpack.c.l.b16 %v240
    %v414 = vunpack.c.h.b16 %v240
    %v415 = vunpack.c.l.b16 %v241
    %v416 = vunpack.c.h.b16 %v241
    %v417 = vunpack.c.l.b16 %v242
    %v418 = vunpack.c.h.b16 %v242
    %v419 = vunpack.c.l.b16 %v243
    %v420 = vunpack.c.h.b16 %v243
    %v421 = vunpack.c.l.b16 %v244
    %v422 = vunpack.c.h.b16 %v244
    %v423 = vunpack.c.l.b16 %v245
    %v424 = vunpack.c.h.b16 %v245
    %v425 = vunpack.c.l.b16 %v246
    %v426 = vunpack.c.h.b16 %v246
    %v427 = vunpack.c.l.b16 %v247
    %v428 = vunpack.c.h.b16 %v247
    %v429 = vunpack.c.l.b16 %v248
    %v430 = vunpack.c.h.b16 %v248
    %v431 = vunpack.c.l.b16 %v249
    %v432 = vunpack.c.h.b16 %v249
    %v433 = vunpack.c.l.b16 %v250
    %v434 = vunpack.c.h.b16 %v250
    %v435 = vunpack.c.l.b16 %v251
    %v436 = vunpack.c.h.b16 %v251
    %v437 = vunpack.c.l.b16 %v252
    %v438 = vunpack.c.h.b16 %v252
    %v439 = vunpack.c.l.b16 %v253
    %v440 = vunpack.c.h.b16 %v253
    %v441 = vunpack.c.l.b16 %v254
    %v442 = vunpack.c.h.b16 %v254
    %v443 = vunpack.c.l.b16 %v255
    %v444 = vunpack.c.h.b16 %v255
    %v445 = vunpack.c.l.b16 %v256
    %v446 = vunpack.c.h.b16 %v256
    %v447 = vunpack.c.l.b16 %v257
    %v448 = vunpack.c.h.b16 %v257
    %v449 = vunpack.c.l.b16 %v258
    %v450 = vunpack.c.h.b16 %v258
    %v451 = vunpack.c.l.b16 %v259
    %v452 = vunpack.c.h.b16 %v259
    %v453 = vunpack.c.l.b16 %v260
    %v454 = vunpack.c.h.b16 %v260
    %v455 = vunpack.c.l.b16 %v261
    %v456 = vunpack.c.h.b16 %v261
    %v457 = vunpack.c.l.b16 %v262
    %v458 = vunpack.c.h.b16 %v262
    %v459 = vunpack.c.l.b16 %v263
    %v460 = vunpack.c.h.b16 %v263
    %v461 = vunpack.c.l.b16 %v264
    %v462 = vunpack.c.h.b16 %v264
    %v463 = vunpack.c.l.b16 %v265
    %v464 = vunpack.c.h.b16 %v265
    %v465 = vunpack.c.l.b16 %v266
    %v466 = vunpack.c.h.b16 %v266
    %v467 = vunpack.c.l.b16 %v267
    %v468 = vunpack.c.h.b16 %v267
    %v469 = vunpack.c.l.b16 %v268
    %v470 = vunpack.c.h.b16 %v268
    %v471 = vunpack.c.l.b16 %v269
    %v472 = vunpack.c.h.b16 %v269
    %v473 = vunpack.c.l.b16 %v270
    %v474 = vunpack.c.h.b16 %v270
    %v475 = vunpack.c.l.b16 %v271
    %v476 = vunpack.c.h.b16 %v271
    %v477 = vunpack.c.l.b16 %v272
    %v478 = vunpack.c.h.b16 %v272
    %v479 = vunpack.c.l.b16 %v273
    %v480 = vunpack.c.h.b16 %v273
    %v481 = vunpack.c.l.b16 %v274
    %v482 = vunpack.c.h.b16 %v274
    %v483 = vunpack.c.l.b16 %v275
    %v484 = vunpack.c.h.b16 %v275
    %v485 = vunpack.c.l.b16 %v276
    %v486 = vunpack.c.h.b16 %v276
    %v487 = vunpack.c.l.b16 %v277
    %v488 = vunpack.c.h.b16 %v277
    %v489 = vunpack.c.l.b16 %v278
    %v490 = vunpack.c.h.b16 %v278
    %v491 = vunpack.c.l.b16 %v279
    %v492 = vunpack.c.h.b16 %v279
    %v493 = vunpack.c.l.b16 %v280
    %v494 = vunpack.c.h.b16 %v280
    %v495 = vunpack.c.l.b16 %v281
    %v496 = vunpack.c.h.b16 %v281
    %v497 = vunpack.c.l.b16 %v282
    %v498 = vunpack.c.h.b16 %v282
    %v499 = vunpack.c.l.b16 %v283
    %v500 = vunpack.c.h.b16 %v283
    %v501 = vunpack.c.l.b16 %v284
    %v502 = vunpack.c.h.b16 %v284
    %v503 = vunpack.c.l.b16 %v285
    %v504 = vunpack.c.h.b16 %v285
    %v505 = vunpack.c.l.b16 %v286
    %v506 = vunpack.c.h.b16 %v286
    %v507 = vunpack.c.l.b16 %v287
    %v508 = vunpack.c.h.b16 %v287
    %v509 = vpack.c.b16 %v385, %v381
    %v510 = vpack.c.b16 %v386, %v382
    %v511 = vpack.c.b16 %v387, %v383
    %v512 = vpack.c.b16 %v388, %v384
    %v513 = vpack.c.b16 %v393, %v389
    %v514 = vpack.c.b16 %v394, %v390
    %v515 = vpack.c.b16 %v395, %v391
    %v516 = vpack.c.b16 %v396, %v392
    %v517 = vpack.c.b16 %v401, %v397
    %v518 = vpack.c.b16 %v402, %v398
    %v519 = vpack.c.b16 %v403, %v399
    %v520 = vpack.c.b16 %v404, %v400
    %v521 = vpack.c.b16 %v409, %v405
    %v522 = vpack.c.b16 %v410, %v406
    %v523 = vpack.c.b16 %v411, %v407
    %v524 = vpack.c.b16 %v412, %v408
    %v525 = vpack.c.b16 %v417, %v413
    %v526 = vpack.c.b16 %v418, %v414
    %v527 = vpack.c.b16 %v419, %v415
    %v528 = vpack.c.b16 %v420, %v416
    %v529 = vpack.c.b16 %v425, %v421
    %v530 = vpack.c.b16 %v426, %v422
    %v531 = vpack.c.b16 %v427, %v423
    %v532 = vpack.c.b16 %v428, %v424
    %v533 = vpack.c.b16 %v433, %v429
    %v534 = vpack.c.b16 %v434, %v430
    %v535 = vpack.c.b16 %v435, %v431
    %v536 = vpack.c.b16 %v436, %v432
    %v537 = vpack.c.b16 %v441, %v437
    %v538 = vpack.c.b16 %v442, %v438
    %v539 = vpack.c.b16 %v443, %v439
    %v540 = vpack.c.b16 %v444, %v440
    %v541 = vpack.c.b16 %v449, %v445
    %v542 = vpack.c.b16 %v450, %v446
    %v543 = vpack.c.b16 %v451, %v447
    %v544 = vpack.c.b16 %v452, %v448
    %v545 = vpack.c.b16 %v457, %v453
    %v546 = vpack.c.b16 %v458, %v454
    %v547 = vpack.c.b16 %v459, %v455
    %v548 = vpack.c.b16 %v460, %v456
    %v549 = vpack.c.b16 %v465, %v461
    %v550 = vpack.c.b16 %v466, %v462
    %v551 = vpack.c.b16 %v467, %v463
    %v552 = vpack.c.b16 %v468, %v464
    %v553 = vpack.c.b16 %v473, %v469
    %v554 = vpack.c.b16 %v474, %v470
    %v555 = vpack.c.b16 %v475, %v471
    %v556 = vpack.c.b16 %v476, %v472
    %v557 = vpack.c.b16 %v481, %v477
    %v558 = vpack.c.b16 %v482, %v478
    %v559 = vpack.c.b16 %v483, %v479
    %v560 = vpack.c.b16 %v484, %v480
    %v561 = vpack.c.b16 %v489, %v485
    %v562 = vpack.c.b16 %v490, %v486
    %v563 = vpack.c.b16 %v491, %v487
    %v564 = vpack.c.b16 %v492, %v488
    %v565 = vpack.c.b16 %v497, %v493
    %v566 = vpack.c.b16 %v498, %v494
    %v567 = vpack.c.b16 %v499, %v495
    %v568 = vpack.c.b16 %v500, %v496
    %v569 = vpack.c.b16 %v505, %v501
    %v570 = vpack.c.b16 %v506, %v502
    %v571 = vpack.c.b16 %v507, %v503
    %v572 = vpack.c.b16 %v508, %v504
    %637 = vmatprep.subr.bf16.mxu0 %v510
    %638 = vmatpush1.bf16.msra.mxu0 %v509
    %639 = vmatprep.subr.bf16.mxu0 %v514
    %640 = vmatpush1.bf16.msra.mxu0 %v513
    %641 = vmatprep.subr.bf16.mxu0 %v518
    %642 = vmatpush1.bf16.msra.mxu0 %v517
    %643 = vmatprep.subr.bf16.mxu0 %v522
    %644 = vmatpush1.bf16.msra.mxu0 %v521
    %645 = vmatprep.subr.bf16.mxu0 %v526
    %646 = vmatpush1.bf16.msra.mxu0 %v525
    %647 = vmatprep.subr.bf16.mxu0 %v530
    %648 = vmatpush1.bf16.msra.mxu0 %v529
    %649 = vmatprep.subr.bf16.mxu0 %v534
    %650 = vmatpush1.bf16.msra.mxu0 %v533
    %651 = vmatprep.subr.bf16.mxu0 %v538
    %652 = vmatpush1.bf16.msra.mxu0 %v537
    %653 = vmatprep.subr.bf16.mxu0 %v542
    %654 = vmatpush1.bf16.msra.mxu0 %v541
    %655 = vmatprep.subr.bf16.mxu0 %v546
    %656 = vmatpush1.bf16.msra.mxu0 %v545
    %657 = vmatprep.subr.bf16.mxu0 %v550
    %658 = vmatpush1.bf16.msra.mxu0 %v549
    %659 = vmatprep.subr.bf16.mxu0 %v554
    %660 = vmatpush1.bf16.msra.mxu0 %v553
    %661 = vmatprep.subr.bf16.mxu0 %v558
    %662 = vmatpush1.bf16.msra.mxu0 %v557
    %663 = vmatprep.subr.bf16.mxu0 %v562
    %664 = vmatpush1.bf16.msra.mxu0 %v561
    %665 = vmatprep.subr.bf16.mxu0 %v566
    %666 = vmatpush1.bf16.msra.mxu0 %v565
    %667 = vmatprep.subr.bf16.mxu0 %v570
    %668 = vmatpush1.bf16.msra.mxu0 %v569
    %669 = vmatprep.mubr.bf16.mxu0 %v314
    %670 = vmatmul.mubr.bf16.gmra.mrb[0].mxu0 %v313
    %v671 = vpop.f32.mrb[0].mxu0
    %v672 = vadd.f32 %v293, %v671
    %v673 = vpop.f32.mrb[0].mxu0
    %v674 = vadd.f32 %v297, %v673
    %v675 = vpop.f32.mrb[0].mxu0
    %v676 = vpop.f32.mrb[0].mxu0
    %677 = vdwg.mxu0
    %678 = vmatprep.subr.bf16.mxu0 %v512
    %679 = vmatpush1.bf16.msra.mxu0 %v511
    %680 = vmatprep.subr.bf16.mxu0 %v516
    %681 = vmatpush1.bf16.msra.mxu0 %v515
    %682 = vmatprep.subr.bf16.mxu0 %v520
    %683 = vmatpush1.bf16.msra.mxu0 %v519
    %684 = vmatprep.subr.bf16.mxu0 %v524
    %685 = vmatpush1.bf16.msra.mxu0 %v523
    %686 = vmatprep.subr.bf16.mxu0 %v528
    %687 = vmatpush1.bf16.msra.mxu0 %v527
    %688 = vmatprep.subr.bf16.mxu0 %v532
    %689 = vmatpush1.bf16.msra.mxu0 %v531
    %690 = vmatprep.subr.bf16.mxu0 %v536
    %691 = vmatpush1.bf16.msra.mxu0 %v535
    %692 = vmatprep.subr.bf16.mxu0 %v540
    %693 = vmatpush1.bf16.msra.mxu0 %v539
    %694 = vmatprep.subr.bf16.mxu0 %v544
    %695 = vmatpush1.bf16.msra.mxu0 %v543
    %696 = vmatprep.subr.bf16.mxu0 %v548
    %697 = vmatpush1.bf16.msra.mxu0 %v547
    %698 = vmatprep.subr.bf16.mxu0 %v552
    %699 = vmatpush1.bf16.msra.mxu0 %v551
    %700 = vmatprep.subr.bf16.mxu0 %v556
    %701 = vmatpush1.bf16.msra.mxu0 %v555
    %702 = vmatprep.subr.bf16.mxu0 %v560
    %703 = vmatpush1.bf16.msra.mxu0 %v559
    %704 = vmatprep.subr.bf16.mxu0 %v564
    %705 = vmatpush1.bf16.msra.mxu0 %v563
    %706 = vmatprep.subr.bf16.mxu0 %v568
    %707 = vmatpush1.bf16.msra.mxu0 %v567
    %708 = vmatprep.subr.bf16.mxu0 %v572
    %709 = vmatpush1.bf16.msra.mxu0 %v571
    %710 = vmatprep.mubr.bf16.mxu0 %v314
    %711 = vmatmul.mubr.bf16.gmra.mrb[0].mxu0 %v313
    %v712 = vpop.f32.mrb[0].mxu0
    %v713 = vadd.f32 %v301, %v712
    %v714 = vpop.f32.mrb[0].mxu0
    %v715 = vadd.f32 %v305, %v714
    %v716 = vpop.f32.mrb[0].mxu0
    %v717 = vpop.f32.mrb[0].mxu0
    %718 = vdwg.mxu0
    %719 = vst [vmem:[#allocation9] sm:$0xff] %v672
    %720 = vst [vmem:[#allocation9 + $0x8] sm:$0xff] %v674
    %721 = vst [vmem:[#allocation9 + $0x10] sm:$0xff] %v713
    %722 = vst [vmem:[#allocation9 + $0x18] sm:$0xff] %v715
    // Predicated region
    $region34: #{tpu_custom_call.1} parent=1 // pred_check
      _
    $region35: #{tpu_custom_call.1} parent=1 // pred_check_branch
      %724 = sbr.rel (0) target = $region37
    $region36: #{tpu_custom_call.1} parent=1 // pred_region
      %s726 = ssub.s32 512, 512
      %727 = vsyncadd [#allocation5], %s726
      %s729 = sshll.u32 [#allocation9], 4
      %s730 = int_to_ptr.vmem [resolvable:$true] %s729
      %732 = dma.vmem_to_hbm [thread:$0]  %s730, 512, %s5, [#allocation5]
    $region37: #{tpu_custom_call.1} parent=1 // pred_fallthru
      _
    // Predicated region
    $region38: #{tpu_custom_call.1} parent=1 // pred_check
      _
    $region39: #{tpu_custom_call.1} parent=1 // pred_check_branch
      %734 = sbr.rel (0) target = $region41
    $region40: #{tpu_custom_call.1} parent=1 // pred_region
      %735 = dma.done [#allocation5], 512
    $region41: #{tpu_custom_call.1} parent=1 // pred_fallthru
      _
    %736 = vsyncpa [#allocation4], 1
    %737 = vsyncpa [#allocation7], 1
    %738 = vsyncpa [#allocation5], 1

</llo_original>
